<compile_context>
chip_gen: v6e
topology: v6e:2x2x1
jax: 0.10.0
libtpu: 0.0.40
codegen_flags: <defaults>
</compile_context>

<pallas_src>
import functools

import jax
import jax.numpy as jnp
from jax.experimental import pallas as pl
from jax.experimental.pallas import tpu as pltpu

EPS = 1e-6
LANES = 128


@functools.lru_cache(maxsize=1)
def _tpu_defaults():
    """(num_core_splits, block_rows) derived from the local device kind."""
    try:
        kind = jax.devices()[0].device_kind.lower()
    except Exception:  # pragma: no cover - CPU / unknown backends
        kind = ""
    if ("v7" in kind) or ("tpu7" in kind) or ("7x" in kind):
        # 2 TensorCores per chip + ~3.2 TB/s HBM: split row blocks across the
        # cores and use larger tiles so the ~0.35us grid-step overhead stays a
        # few percent of each step (3 inputs x 2 buffers x 2 MiB = 12 MiB).
        return 2, 4096
    # Single-TC v5e / v6e: 2048-row tiles already sit at the HBM roofline.
    return 1, 2048


def _hybrid_loss_sums_kernel(yp_ref, yt_ref, w_ref, acc_ref, *,
                             rows_total, blocks_per_core):
    c = pl.program_id(0)            # core / parallel axis
    j = pl.program_id(1)            # sequential block axis (resident accumulator)

    @pl.when(j == 0)
    def _init():
        acc_ref[...] = jnp.zeros_like(acc_ref)

    blk_rows = yp_ref.shape[0]
    block_idx = c * blocks_per_core + j        # logical (unclamped) block id

    def _accumulate(yp, yt, w):
        yp = jnp.maximum(yp, EPS)                          # torch.clamp(min=eps)
        log_diff = jnp.log(yp + 1.0) - jnp.log(yt + 1.0)   # two logs == reference
        sq = jnp.sum(w * (log_diff * log_diff), axis=0, keepdims=True)  # (1, LANES)
        ab = jnp.sum(w * jnp.abs(yp - yt), axis=0, keepdims=True)
        sw = jnp.sum(w, axis=0, keepdims=True)
        # Packed lane-wise accumulators: row 0 = sum(w*ld^2), 1 = sum(w*|d|), 2 = sum(w).
        acc_ref[0, 0:1, :] += sq
        acc_ref[0, 1:2, :] += ab
        acc_ref[0, 2:3, :] += sw

    # Fast path: block lies entirely inside the logical row range.
    is_full = (block_idx + 1) * blk_rows <= rows_total

    @pl.when(is_full)
    def _full_block():
        _accumulate(yp_ref[...].astype(jnp.float32),
                    yt_ref[...].astype(jnp.float32),
                    w_ref[...].astype(jnp.float32))

    # Slow path: ragged last block, or a block the clamped index_map re-read
    # because n_blocks didn't split evenly over cores.  Sanitise values (edge
    # padding may be NaN/Inf garbage) and force their weight to zero.
    @pl.when(jnp.logical_not(is_full))
    def _partial_block():
        row_ids = jax.lax.broadcasted_iota(jnp.int32, (blk_rows, 1), 0)
        valid = (block_idx * blk_rows + row_ids) < rows_total
        yp = jnp.where(valid, yp_ref[...].astype(jnp.float32), 1.0)
        yt = jnp.where(valid, yt_ref[...].astype(jnp.float32), 1.0)
        w = jnp.where(valid, w_ref[...].astype(jnp.float32), 0.0)
        _accumulate(yp, yt, w)


def _run_sums(yp2d, yt2d, w2d, rows, num_cores, block_rows):
    block_rows = min(block_rows, rows)
    n_blocks = pl.cdiv(rows, block_rows)
    num_cores = min(num_cores, n_blocks)
    bpc = pl.cdiv(n_blocks, num_cores)          # blocks per core

    def in_map(c, j):
        # Clamp so the auto-DMA never indexes past the last block; the kernel's
        # partial-block path zeroes any duplicated / out-of-range rows.
        return (jnp.minimum(c * bpc + j, n_blocks - 1), 0)

    tile_spec = pl.BlockSpec((block_rows, LANES), in_map)
    acc_spec = pl.BlockSpec((1, 3, LANES), lambda c, j: (c, 0, 0))
    acc_shape = jax.ShapeDtypeStruct((num_cores, 3, LANES), jnp.float32)

    kernel = functools.partial(_hybrid_loss_sums_kernel,
                               rows_total=rows, blocks_per_core=bpc)

    elems = rows * LANES
    in_bytes = yp2d.dtype.itemsize
    # 3 inputs x 2 pipeline buffers, plus headroom for the per-block f32
    # intermediates the VPU ops materialise in VMEM.
    buf_bytes = 6 * block_rows * LANES * in_bytes
    tmp_bytes = 8 * block_rows * LANES * 4
    vmem_limit = int(min(max(16 << 20, buf_bytes + tmp_bytes + (2 << 20)), 48 << 20))

    return pl.pallas_call(
        kernel,
        out_shape=acc_shape,
        grid_spec=pltpu.PrefetchScalarGridSpec(
            num_scalar_prefetch=0,
            grid=(num_cores, bpc),
            in_specs=[tile_spec, tile_spec, tile_spec],
            out_specs=acc_spec,
        ),
        compiler_params=pltpu.CompilerParams(
            dimension_semantics=("parallel", "arbitrary"),
            vmem_limit_bytes=vmem_limit),
        cost_estimate=pl.CostEstimate(
            flops=12 * elems,
            transcendentals=2 * elems,
            bytes_accessed=3 * elems * in_bytes + num_cores * 3 * LANES * 4),
    )(yp2d, yt2d, w2d)


@functools.partial(jax.jit, static_argnames=("alpha", "block_rows", "num_cores"))
def hybrid_loss(y_pred, y_true, w, alpha=0.8, *, block_rows=None, num_cores=None):
    """Pallas TPU implementation of HybridLoss.forward."""
    yp = y_pred.reshape(-1)
    yt = y_true.reshape(-1)
    ww = w.reshape(-1)

    n = yp.shape[0]
    if n == 0:
        # Reference semantics: sum(w) == 0 -> 0/0 -> NaN.
        return jnp.float32(jnp.nan)

    auto_cores, auto_rows = _tpu_defaults()
    num_cores = auto_cores if num_cores is None else int(num_cores)
    block_rows = auto_rows if block_rows is None else int(block_rows)

    # Lane alignment: static branch, zero extra HBM traffic when n % 128 == 0.
    # Pad values are finite and the pad weight is 0 -> no contribution.
    # TODO(synk): zero-copy ragged-tail handling to avoid this copy entirely.
    lane_pad = (-n) % LANES
    if lane_pad:
        yp = jnp.pad(yp, (0, lane_pad))
        yt = jnp.pad(yt, (0, lane_pad))
        ww = jnp.pad(ww, (0, lane_pad))

    rows = (n + lane_pad) // LANES
    acc = _run_sums(yp.reshape(rows, LANES), yt.reshape(rows, LANES),
                    ww.reshape(rows, LANES), rows, num_cores, block_rows)

    # Tiny cross-lane / cross-core finish in XLA (num_cores x 3 x 128 elements).
    s_sq = jnp.sum(acc[:, 0, :])
    s_ab = jnp.sum(acc[:, 1, :])
    s_w = jnp.sum(acc[:, 2, :])   # all-zero weights -> NaN, same as the reference

    nwrmsle = jnp.sqrt(s_sq / s_w)
    mae = s_ab / s_w
    return alpha * nwrmsle + (1.0 - alpha) * mae


def _reference(y_pred, y_true, w, alpha=0.8):
    # Bit-for-bit mirror of the PyTorch module.
    yp = jnp.maximum(y_pred.astype(jnp.float32), EPS)
    yt = y_true.astype(jnp.float32)
    log_diff = jnp.log(yp + 1.0) - jnp.log(yt + 1.0)
    sw = jnp.sum(w)
    nwrmsle = jnp.sqrt(jnp.sum(w * log_diff ** 2) / sw)
    mae = jnp.sum(w * jnp.abs(yp - yt)) / sw
    return alpha * nwrmsle + (1.0 - alpha) * mae


if __name__ == "__main__":
    key = jax.random.PRNGKey(0)
    k1, k2, k3, k4, k5, k6 = jax.random.split(key, 6)

    # Test 1: NCHW-style tensor, n % 128 == 0 -> zero-copy path, fast blocks only.
    shape = (2, 4, 16, 16)
    y_pred = jax.random.uniform(k1, shape, jnp.float32, minval=0.0, maxval=5.0)
    y_true = jax.random.uniform(k2, shape, jnp.float32, minval=0.0, maxval=5.0)
    w = jax.random.uniform(k3, shape, jnp.float32, minval=0.1, maxval=2.0)

    loss = hybrid_loss(y_pred, y_true, w, alpha=0.8)
    jax.block_until_ready(loss)
    ref = _reference(y_pred, y_true, w, alpha=0.8)
    assert jnp.allclose(loss, ref, rtol=1e-5, atol=1e-5), (loss, ref)

    # Test 2: ragged size (n % 128 != 0) + forced small blocks + 2-way core
    # split -> exercises the masked partial-block path and the clamped
    # duplicated-block path.
    shape2 = (3, 849)  # 2547 elements -> 20 padded rows of 128
    y_pred2 = jax.random.uniform(k4, shape2, jnp.float32, minval=0.0, maxval=5.0)
    y_true2 = jax.random.uniform(k5, shape2, jnp.float32, minval=0.0, maxval=5.0)
    w2 = jax.random.uniform(k6, shape2, jnp.float32, minval=0.1, maxval=2.0)

    loss2 = hybrid_loss(y_pred2, y_true2, w2, alpha=0.8, block_rows=8, num_cores=2)
    jax.block_until_ready(loss2)
    ref2 = _reference(y_pred2, y_true2, w2, alpha=0.8)
    assert jnp.allclose(loss2, ref2, rtol=1e-5, atol=1e-5), (loss2, ref2)

    print("KERNEL_OK")
</pallas_src>

<mosaic_0001>
module attributes {stable_mosaic.version = 11 : i64} {
  func.func @_hybrid_loss_sums_kernel(%arg0: i32, %arg1: i32, %arg2: memref<16x128xf32, #tpu.memory_space<vmem>>, %arg3: memref<16x128xf32, #tpu.memory_space<vmem>>, %arg4: memref<16x128xf32, #tpu.memory_space<vmem>>, %arg5: memref<1x3x128xf32, #tpu.memory_space<vmem>>) attributes {dimension_semantics = [#tpu.dimension_semantics<parallel>, #tpu.dimension_semantics<arbitrary>], iteration_bounds = array<i64: 1, 1>, scalar_prefetch = 0 : i64, scratch_operands = 0 : i64, tpu.core_type = #tpu.core_type<tc>, window_params = [{transform_indices = @transform_0, window_bounds = array<i64: 16, 128>}, {transform_indices = @transform_1, window_bounds = array<i64: 16, 128>}, {transform_indices = @transform_2, window_bounds = array<i64: 16, 128>}, {transform_indices = @transform_3, window_bounds = array<i64: 1, 3, 128>}]} {
    %c0_i32 = arith.constant 0 : i32
    %0 = arith.cmpi eq, %arg1, %c0_i32 : i32
    %1 = arith.extui %0 : i1 to i32
    %c0_i32_0 = arith.constant 0 : i32
    %2 = arith.cmpi ne, %1, %c0_i32_0 : i32
    scf.if %2 {
      %cst = arith.constant 0.000000e+00 : f32
      %13 = vector.broadcast %cst : f32 to vector<1x3x128xf32>
      %c0 = arith.constant 0 : index
      %c0_5 = arith.constant 0 : index
      %c0_6 = arith.constant 0 : index
      %14 = vector.load %arg5[%c0, %c0_5, %c0_6] : memref<1x3x128xf32, #tpu.memory_space<vmem>>, vector<1x3x128xf32>
      tpu.vector_store %arg5[%c0, %c0_5, %c0_6], %13 {strides = array<i32>} : memref<1x3x128xf32, #tpu.memory_space<vmem>>, vector<1x3x128xf32>,
    } else {
    }
    %c1_i32 = arith.constant 1 : i32
    %3 = arith.muli %arg0, %c1_i32 : i32
    %4 = arith.addi %3, %arg1 : i32
    %c1_i32_1 = arith.constant 1 : i32
    %5 = arith.addi %4, %c1_i32_1 : i32
    %c16_i32 = arith.constant 16 : i32
    %6 = arith.muli %5, %c16_i32 : i32
    %c16_i32_2 = arith.constant 16 : i32
    %7 = arith.cmpi sle, %6, %c16_i32_2 : i32
    %8 = arith.extui %7 : i1 to i32
    %c0_i32_3 = arith.constant 0 : i32
    %9 = arith.cmpi ne, %8, %c0_i32_3 : i32
    scf.if %9 {
      %c0 = arith.constant 0 : index
      %c0_5 = arith.constant 0 : index
      %13 = vector.load %arg2[%c0, %c0_5] : memref<16x128xf32, #tpu.memory_space<vmem>>, vector<16x128xf32>
      %c0_6 = arith.constant 0 : index
      %c0_7 = arith.constant 0 : index
      %14 = vector.load %arg3[%c0_6, %c0_7] : memref<16x128xf32, #tpu.memory_space<vmem>>, vector<16x128xf32>
      %c0_8 = arith.constant 0 : index
      %c0_9 = arith.constant 0 : index
      %15 = vector.load %arg4[%c0_8, %c0_9] : memref<16x128xf32, #tpu.memory_space<vmem>>, vector<16x128xf32>
      %cst = arith.constant 9.99999997E-7 : f32
      %16 = vector.broadcast %cst : f32 to vector<16x128xf32>
      %17 = arith.maximumf %13, %16 : vector<16x128xf32>
      %cst_10 = arith.constant 1.000000e+00 : f32
      %18 = vector.broadcast %cst_10 : f32 to vector<16x128xf32>
      %19 = arith.addf %17, %18 : vector<16x128xf32>
      %20 = math.log %19 : vector<16x128xf32>
      %cst_11 = arith.constant 1.000000e+00 : f32
      %21 = vector.broadcast %cst_11 : f32 to vector<16x128xf32>
      %22 = arith.addf %14, %21 : vector<16x128xf32>
      %23 = math.log %22 : vector<16x128xf32>
      %24 = arith.subf %20, %23 : vector<16x128xf32>
      %25 = arith.mulf %24, %24 : vector<16x128xf32>
      %26 = arith.mulf %15, %25 : vector<16x128xf32>
      %cst_12 = arith.constant dense<0.000000e+00> : vector<128xf32>
      %27 = vector.multi_reduction <add>, %26, %cst_12 [0] : vector<16x128xf32> to vector<128xf32>
      %28 = vector.shape_cast %27 : vector<128xf32> to vector<1x128xf32>
      %29 = arith.subf %17, %14 : vector<16x128xf32>
      %30 = math.absf %29 : vector<16x128xf32>
      %31 = arith.mulf %15, %30 : vector<16x128xf32>
      %cst_13 = arith.constant dense<0.000000e+00> : vector<128xf32>
      %32 = vector.multi_reduction <add>, %31, %cst_13 [0] : vector<16x128xf32> to vector<128xf32>
      %33 = vector.shape_cast %32 : vector<128xf32> to vector<1x128xf32>
      %cst_14 = arith.constant dense<0.000000e+00> : vector<128xf32>
      %34 = vector.multi_reduction <add>, %15, %cst_14 [0] : vector<16x128xf32> to vector<128xf32>
      %35 = vector.shape_cast %34 : vector<128xf32> to vector<1x128xf32>
      %c0_15 = arith.constant 0 : index
      %c0_16 = arith.constant 0 : index
      %c0_17 = arith.constant 0 : index
      %36 = vector.load %arg5[%c0_15, %c0_16, %c0_17] : memref<1x3x128xf32, #tpu.memory_space<vmem>>, vector<1x1x128xf32>
      %37 = vector.shape_cast %36 : vector<1x1x128xf32> to vector<1x128xf32>
      %38 = arith.addf %37, %28 : vector<1x128xf32>
      %c0_18 = arith.constant 0 : index
      %c0_19 = arith.constant 0 : index
      %c0_20 = arith.constant 0 : index
      %39 = vector.load %arg5[%c0_18, %c0_19, %c0_20] : memref<1x3x128xf32, #tpu.memory_space<vmem>>, vector<1x1x128xf32>
      %40 = vector.shape_cast %39 : vector<1x1x128xf32> to vector<1x128xf32>
      %41 = vector.shape_cast %38 : vector<1x128xf32> to vector<1x1x128xf32>
      tpu.vector_store %arg5[%c0_18, %c0_19, %c0_20], %41 {strides = array<i32>} : memref<1x3x128xf32, #tpu.memory_space<vmem>>, vector<1x1x128xf32>,
      %c0_21 = arith.constant 0 : index
      %c1 = arith.constant 1 : index
      %c0_22 = arith.constant 0 : index
      %42 = vector.load %arg5[%c0_21, %c1, %c0_22] : memref<1x3x128xf32, #tpu.memory_space<vmem>>, vector<1x1x128xf32>
      %43 = vector.shape_cast %42 : vector<1x1x128xf32> to vector<1x128xf32>
      %44 = arith.addf %43, %33 : vector<1x128xf32>
      %c0_23 = arith.constant 0 : index
      %c1_24 = arith.constant 1 : index
      %c0_25 = arith.constant 0 : index
      %45 = vector.load %arg5[%c0_23, %c1_24, %c0_25] : memref<1x3x128xf32, #tpu.memory_space<vmem>>, vector<1x1x128xf32>
      %46 = vector.shape_cast %45 : vector<1x1x128xf32> to vector<1x128xf32>
      %47 = vector.shape_cast %44 : vector<1x128xf32> to vector<1x1x128xf32>
      tpu.vector_store %arg5[%c0_23, %c1_24, %c0_25], %47 {strides = array<i32>} : memref<1x3x128xf32, #tpu.memory_space<vmem>>, vector<1x1x128xf32>,
      %c0_26 = arith.constant 0 : index
      %c2 = arith.constant 2 : index
      %c0_27 = arith.constant 0 : index
      %48 = vector.load %arg5[%c0_26, %c2, %c0_27] : memref<1x3x128xf32, #tpu.memory_space<vmem>>, vector<1x1x128xf32>
      %49 = vector.shape_cast %48 : vector<1x1x128xf32> to vector<1x128xf32>
      %50 = arith.addf %49, %35 : vector<1x128xf32>
      %c0_28 = arith.constant 0 : index
      %c2_29 = arith.constant 2 : index
      %c0_30 = arith.constant 0 : index
      %51 = vector.load %arg5[%c0_28, %c2_29, %c0_30] : memref<1x3x128xf32, #tpu.memory_space<vmem>>, vector<1x1x128xf32>
      %52 = vector.shape_cast %51 : vector<1x1x128xf32> to vector<1x128xf32>
      %53 = vector.shape_cast %50 : vector<1x128xf32> to vector<1x1x128xf32>
      tpu.vector_store %arg5[%c0_28, %c2_29, %c0_30], %53 {strides = array<i32>} : memref<1x3x128xf32, #tpu.memory_space<vmem>>, vector<1x1x128xf32>,
    } else {
    }
    %true = arith.constant true
    %10 = arith.xori %7, %true : i1
    %11 = arith.extui %10 : i1 to i32
    %c0_i32_4 = arith.constant 0 : i32
    %12 = arith.cmpi ne, %11, %c0_i32_4 : i32
    scf.if %12 {
      %13 = tpu.iota {dimensions = array<i32: 0>} : vector<16x1xi32>
      %c16_i32_5 = arith.constant 16 : i32
      %14 = arith.muli %4, %c16_i32_5 : i32
      %15 = vector.broadcast %14 : i32 to vector<16x1xi32>
      %16 = arith.addi %15, %13 : vector<16x1xi32>
      %c16_i32_6 = arith.constant 16 : i32
      %17 = vector.broadcast %c16_i32_6 : i32 to vector<16x1xi32>
      %18 = arith.cmpi slt, %16, %17 : vector<16x1xi32>
      %c0 = arith.constant 0 : index
      %c0_7 = arith.constant 0 : index
      %19 = vector.load %arg2[%c0, %c0_7] : memref<16x128xf32, #tpu.memory_space<vmem>>, vector<16x128xf32>
      %cst = arith.constant 1.000000e+00 : f32
      %20 = vector.shape_cast %18 : vector<16x1xi1> to vector<16x1xi1>
      %21 = vector.broadcast %20 : vector<16x1xi1> to vector<16x128xi1>
      %22 = vector.broadcast %cst : f32 to vector<16x128xf32>
      %23 = arith.select %21, %19, %22 : vector<16x128xi1>, vector<16x128xf32>
      %c0_8 = arith.constant 0 : index
      %c0_9 = arith.constant 0 : index
      %24 = vector.load %arg3[%c0_8, %c0_9] : memref<16x128xf32, #tpu.memory_space<vmem>>, vector<16x128xf32>
      %cst_10 = arith.constant 1.000000e+00 : f32
      %25 = vector.shape_cast %18 : vector<16x1xi1> to vector<16x1xi1>
      %26 = vector.broadcast %25 : vector<16x1xi1> to vector<16x128xi1>
      %27 = vector.broadcast %cst_10 : f32 to vector<16x128xf32>
      %28 = arith.select %26, %24, %27 : vector<16x128xi1>, vector<16x128xf32>
      %c0_11 = arith.constant 0 : index
      %c0_12 = arith.constant 0 : index
      %29 = vector.load %arg4[%c0_11, %c0_12] : memref<16x128xf32, #tpu.memory_space<vmem>>, vector<16x128xf32>
      %cst_13 = arith.constant 0.000000e+00 : f32
      %30 = vector.shape_cast %18 : vector<16x1xi1> to vector<16x1xi1>
      %31 = vector.broadcast %30 : vector<16x1xi1> to vector<16x128xi1>
      %32 = vector.broadcast %cst_13 : f32 to vector<16x128xf32>
      %33 = arith.select %31, %29, %32 : vector<16x128xi1>, vector<16x128xf32>
      %cst_14 = arith.constant 9.99999997E-7 : f32
      %34 = vector.broadcast %cst_14 : f32 to vector<16x128xf32>
      %35 = arith.maximumf %23, %34 : vector<16x128xf32>
      %cst_15 = arith.constant 1.000000e+00 : f32
      %36 = vector.broadcast %cst_15 : f32 to vector<16x128xf32>
      %37 = arith.addf %35, %36 : vector<16x128xf32>
      %38 = math.log %37 : vector<16x128xf32>
      %cst_16 = arith.constant 1.000000e+00 : f32
      %39 = vector.broadcast %cst_16 : f32 to vector<16x128xf32>
      %40 = arith.addf %28, %39 : vector<16x128xf32>
      %41 = math.log %40 : vector<16x128xf32>
      %42 = arith.subf %38, %41 : vector<16x128xf32>
      %43 = arith.mulf %42, %42 : vector<16x128xf32>
      %44 = arith.mulf %33, %43 : vector<16x128xf32>
      %cst_17 = arith.constant dense<0.000000e+00> : vector<128xf32>
      %45 = vector.multi_reduction <add>, %44, %cst_17 [0] : vector<16x128xf32> to vector<128xf32>
      %46 = vector.shape_cast %45 : vector<128xf32> to vector<1x128xf32>
      %47 = arith.subf %35, %28 : vector<16x128xf32>
      %48 = math.absf %47 : vector<16x128xf32>
      %49 = arith.mulf %33, %48 : vector<16x128xf32>
      %cst_18 = arith.constant dense<0.000000e+00> : vector<128xf32>
      %50 = vector.multi_reduction <add>, %49, %cst_18 [0] : vector<16x128xf32> to vector<128xf32>
      %51 = vector.shape_cast %50 : vector<128xf32> to vector<1x128xf32>
      %cst_19 = arith.constant dense<0.000000e+00> : vector<128xf32>
      %52 = vector.multi_reduction <add>, %33, %cst_19 [0] : vector<16x128xf32> to vector<128xf32>
      %53 = vector.shape_cast %52 : vector<128xf32> to vector<1x128xf32>
      %c0_20 = arith.constant 0 : index
      %c0_21 = arith.constant 0 : index
      %c0_22 = arith.constant 0 : index
      %54 = vector.load %arg5[%c0_20, %c0_21, %c0_22] : memref<1x3x128xf32, #tpu.memory_space<vmem>>, vector<1x1x128xf32>
      %55 = vector.shape_cast %54 : vector<1x1x128xf32> to vector<1x128xf32>
      %56 = arith.addf %55, %46 : vector<1x128xf32>
      %c0_23 = arith.constant 0 : index
      %c0_24 = arith.constant 0 : index
      %c0_25 = arith.constant 0 : index
      %57 = vector.load %arg5[%c0_23, %c0_24, %c0_25] : memref<1x3x128xf32, #tpu.memory_space<vmem>>, vector<1x1x128xf32>
      %58 = vector.shape_cast %57 : vector<1x1x128xf32> to vector<1x128xf32>
      %59 = vector.shape_cast %56 : vector<1x128xf32> to vector<1x1x128xf32>
      tpu.vector_store %arg5[%c0_23, %c0_24, %c0_25], %59 {strides = array<i32>} : memref<1x3x128xf32, #tpu.memory_space<vmem>>, vector<1x1x128xf32>,
      %c0_26 = arith.constant 0 : index
      %c1 = arith.constant 1 : index
      %c0_27 = arith.constant 0 : index
      %60 = vector.load %arg5[%c0_26, %c1, %c0_27] : memref<1x3x128xf32, #tpu.memory_space<vmem>>, vector<1x1x128xf32>
      %61 = vector.shape_cast %60 : vector<1x1x128xf32> to vector<1x128xf32>
      %62 = arith.addf %61, %51 : vector<1x128xf32>
      %c0_28 = arith.constant 0 : index
      %c1_29 = arith.constant 1 : index
      %c0_30 = arith.constant 0 : index
      %63 = vector.load %arg5[%c0_28, %c1_29, %c0_30] : memref<1x3x128xf32, #tpu.memory_space<vmem>>, vector<1x1x128xf32>
      %64 = vector.shape_cast %63 : vector<1x1x128xf32> to vector<1x128xf32>
      %65 = vector.shape_cast %62 : vector<1x128xf32> to vector<1x1x128xf32>
      tpu.vector_store %arg5[%c0_28, %c1_29, %c0_30], %65 {strides = array<i32>} : memref<1x3x128xf32, #tpu.memory_space<vmem>>, vector<1x1x128xf32>,
      %c0_31 = arith.constant 0 : index
      %c2 = arith.constant 2 : index
      %c0_32 = arith.constant 0 : index
      %66 = vector.load %arg5[%c0_31, %c2, %c0_32] : memref<1x3x128xf32, #tpu.memory_space<vmem>>, vector<1x1x128xf32>
      %67 = vector.shape_cast %66 : vector<1x1x128xf32> to vector<1x128xf32>
      %68 = arith.addf %67, %53 : vector<1x128xf32>
      %c0_33 = arith.constant 0 : index
      %c2_34 = arith.constant 2 : index
      %c0_35 = arith.constant 0 : index
      %69 = vector.load %arg5[%c0_33, %c2_34, %c0_35] : memref<1x3x128xf32, #tpu.memory_space<vmem>>, vector<1x1x128xf32>
      %70 = vector.shape_cast %69 : vector<1x1x128xf32> to vector<1x128xf32>
      %71 = vector.shape_cast %68 : vector<1x128xf32> to vector<1x1x128xf32>
      tpu.vector_store %arg5[%c0_33, %c2_34, %c0_35], %71 {strides = array<i32>} : memref<1x3x128xf32, #tpu.memory_space<vmem>>, vector<1x1x128xf32>,
    } else {
    }
    return
  }
  func.func @transform_0(%arg0: i32, %arg1: i32) -> (i32, i32) {
    %c1_i32 = arith.constant 1 : i32
    %0 = arith.muli %arg0, %c1_i32 : i32
    %1 = arith.addi %0, %arg1 : i32
    %c0_i32 = arith.constant 0 : i32
    %2 = arith.minsi %1, %c0_i32 : i32
    %c0_i32_0 = arith.constant 0 : i32
    %c0_i32_1 = arith.constant 0 : i32
    return %2, %c0_i32_0 : i32, i32
  }
  func.func @transform_1(%arg0: i32, %arg1: i32) -> (i32, i32) {
    %c1_i32 = arith.constant 1 : i32
    %0 = arith.muli %arg0, %c1_i32 : i32
    %1 = arith.addi %0, %arg1 : i32
    %c0_i32 = arith.constant 0 : i32
    %2 = arith.minsi %1, %c0_i32 : i32
    %c0_i32_0 = arith.constant 0 : i32
    %c0_i32_1 = arith.constant 0 : i32
    return %2, %c0_i32_0 : i32, i32
  }
  func.func @transform_2(%arg0: i32, %arg1: i32) -> (i32, i32) {
    %c1_i32 = arith.constant 1 : i32
    %0 = arith.muli %arg0, %c1_i32 : i32
    %1 = arith.addi %0, %arg1 : i32
    %c0_i32 = arith.constant 0 : i32
    %2 = arith.minsi %1, %c0_i32 : i32
    %c0_i32_0 = arith.constant 0 : i32
    %c0_i32_1 = arith.constant 0 : i32
    return %2, %c0_i32_0 : i32, i32
  }
  func.func @transform_3(%arg0: i32, %arg1: i32) -> (i32, i32, i32) {
    %c0_i32 = arith.constant 0 : i32
    %c0_i32_0 = arith.constant 0 : i32
    %c0_i32_1 = arith.constant 0 : i32
    return %arg0, %c0_i32, %c0_i32_0 : i32, i32, i32
  }
}

</mosaic_0001>

<llo_original>
// kernel: hybrid_loss.1
$region0: #{hybrid_loss.1}
  #allocation0 [shape = 'u32[]', space=smem, size = 0x4, offset = 0x4, fixed_abs, tag = 'smem constant byte address 0x4 - core index']
  #allocation1 [shape = 'u32[144,128]{1,0:T(1,128)}', space=vmem, size = 0x12000, scoped, tag = 'internal scratch']
  %s0 = inlined_call_operand.vmem [shape: f32[16,128], index: 0, kind: input, shape index: {}]
  %s1 = inlined_call_operand.vmem [shape: f32[16,128], index: 1, kind: input, shape index: {}]
  %s2 = inlined_call_operand.vmem [shape: f32[16,128], index: 2, kind: input, shape index: {}]
  %s3 = inlined_call_operand.vmem [shape: f32[1,3,128], index: 3, kind: output, shape index: {}]
  %s4 = sld [smem:[#allocation0]]
  $region34: #{hybrid_loss.1} parent=0
    _
  %s6 = ssub.s32 1, %s4
  %s7 = scalar_select 0, %s6, %s4
  // Predicated region
  $region2: #{hybrid_loss.1} parent=0 // pred_check
    _
  $region3: #{hybrid_loss.1} parent=0 // pred_check_branch
    %9 = sbr.rel (0) target = $region5
  $region4: #{hybrid_loss.1} parent=0 // pred_region
    %s10 = sadd.s32 0, 0
    %p11 = scmp.lt.s32.totalorder %s10, 0
    %s12 = scalar_select %p11, %s10, 0
    %s13 = smul.u32 2, %s12
    %p14 = scmp.lt.s32.totalorder %s13, 1
    %s15 = scalar_select %p14, %s13, 1
    %s16 = smul.addr %s15, 8
    %s17 = scalar_lea.vmem %s0, %s16
    %s18 = sadd.s32 0, 0
    %p19 = scmp.lt.s32.totalorder %s18, 0
    %s20 = scalar_select %p19, %s18, 0
    %s21 = smul.u32 2, %s20
  $region5: #{hybrid_loss.1} parent=0 // pred_fallthru
    _
  // Predicated region
  $region6: #{hybrid_loss.1} parent=0 // pred_check
    _
  $region7: #{hybrid_loss.1} parent=0 // pred_check_branch
    %23 = sbr.rel (0) target = $region9
  $region8: #{hybrid_loss.1} parent=0 // pred_region
    %s24 = sadd.s32 0, 0
    %p25 = scmp.lt.s32.totalorder %s24, 0
    %s26 = scalar_select %p25, %s24, 0
    %s27 = smul.u32 2, %s26
    %p28 = scmp.lt.s32.totalorder %s27, 1
    %s29 = scalar_select %p28, %s27, 1
    %s30 = smul.addr %s29, 8
    %s31 = scalar_lea.vmem %s1, %s30
    %s32 = sadd.s32 0, 0
    %p33 = scmp.lt.s32.totalorder %s32, 0
    %s34 = scalar_select %p33, %s32, 0
    %s35 = smul.u32 2, %s34
  $region9: #{hybrid_loss.1} parent=0 // pred_fallthru
    _
  // Predicated region
  $region10: #{hybrid_loss.1} parent=0 // pred_check
    _
  $region11: #{hybrid_loss.1} parent=0 // pred_check_branch
    %37 = sbr.rel (0) target = $region13
  $region12: #{hybrid_loss.1} parent=0 // pred_region
    %s38 = sadd.s32 0, 0
    %p39 = scmp.lt.s32.totalorder %s38, 0
    %s40 = scalar_select %p39, %s38, 0
    %s41 = smul.u32 2, %s40
    %p42 = scmp.lt.s32.totalorder %s41, 1
    %s43 = scalar_select %p42, %s41, 1
    %s44 = smul.addr %s43, 8
    %s45 = scalar_lea.vmem %s2, %s44
    %s46 = sadd.s32 0, 0
    %p47 = scmp.lt.s32.totalorder %s46, 0
    %s48 = scalar_select %p47, %s46, 0
    %s49 = smul.u32 2, %s48
  $region13: #{hybrid_loss.1} parent=0 // pred_fallthru
    _
  %s50 = sadd.s32 0, 0
  %p51 = scmp.lt.s32.totalorder %s50, 0
  %s52 = scalar_select %p51, %s50, 0
  %s53 = smul.u32 2, %s52
  %p54 = scmp.lt.s32.totalorder %s53, 1
  %s55 = scalar_select %p54, %s53, 1
  %s56 = smul.addr %s55, 8
  %s57 = scalar_lea.vmem %s0, %s56
  %s58 = sadd.s32 0, 0
  %p59 = scmp.lt.s32.totalorder %s58, 0
  %s60 = scalar_select %p59, %s58, 0
  %s61 = smul.u32 2, %s60
  %p62 = scmp.lt.s32.totalorder %s61, 1
  %s63 = scalar_select %p62, %s61, 1
  %s64 = smul.addr %s63, 8
  %s65 = scalar_lea.vmem %s1, %s64
  %s66 = sadd.s32 0, 0
  %p67 = scmp.lt.s32.totalorder %s66, 0
  %s68 = scalar_select %p67, %s66, 0
  %s69 = smul.u32 2, %s68
  %p70 = scmp.lt.s32.totalorder %s69, 1
  %s71 = scalar_select %p70, %s69, 1
  %s72 = smul.addr %s71, 8
  %s73 = scalar_lea.vmem %s2, %s72
  %s74 = sadd.s32 0, 0
  %p75 = scmp.lt.s32.totalorder %s74, 0
  %s76 = scalar_select %p75, %s74, 0
  %s77 = smul.u32 2, %s76
  %p78 = scmp.lt.s32.totalorder %s77, 1
  %s79 = scalar_select %p78, %s77, 1
  %s80 = smul.addr %s79, 8
  %s81 = scalar_lea.vmem %s0, %s80
  %s82 = sadd.s32 0, 0
  %p83 = scmp.lt.s32.totalorder %s82, 0
  %s84 = scalar_select %p83, %s82, 0
  %s85 = smul.u32 2, %s84
  %s86 = sadd.s32 0, 0
  %p87 = scmp.lt.s32.totalorder %s86, 0
  %s88 = scalar_select %p87, %s86, 0
  %s89 = smul.u32 2, %s88
  %p90 = scmp.lt.s32.totalorder %s89, 1
  %s91 = scalar_select %p90, %s89, 1
  %s92 = smul.addr %s91, 8
  %s93 = scalar_lea.vmem %s1, %s92
  %s94 = sadd.s32 0, 0
  %p95 = scmp.lt.s32.totalorder %s94, 0
  %s96 = scalar_select %p95, %s94, 0
  %s97 = smul.u32 2, %s96
  %s98 = sadd.s32 0, 0
  %p99 = scmp.lt.s32.totalorder %s98, 0
  %s100 = scalar_select %p99, %s98, 0
  %s101 = smul.u32 2, %s100
  %p102 = scmp.lt.s32.totalorder %s101, 1
  %s103 = scalar_select %p102, %s101, 1
  %s104 = smul.addr %s103, 8
  %s105 = scalar_lea.vmem %s2, %s104
  %s106 = sadd.s32 0, 0
  %p107 = scmp.lt.s32.totalorder %s106, 0
  %s108 = scalar_select %p107, %s106, 0
  %s109 = smul.u32 2, %s108
  %p110 = scmp.eq.s32.totalorder 0, 0
  // Predicated region
  $region14: #{hybrid_loss.1} parent=0 // pred_check
    %p111 = pneg %p110
  $region15: #{hybrid_loss.1} parent=0 // pred_check_branch
    %113 = sbr.rel (%p111) target = $region17
  $region16: #{hybrid_loss.1} parent=0 // pred_region
    %114 = vst [vmem:[%s3] sm:$0x7] 0.0
  $region17: #{hybrid_loss.1} parent=0 // pred_fallthru
    _
  %s115 = sadd.s32 0, 0
  %s116 = sadd.s32 %s115, 1
  %s117 = smul.u32 %s116, 16
  %p118 = scmp.le.s32.totalorder %s117, 16
  // Predicated region
  $region18: #{hybrid_loss.1} parent=0 // pred_check
    %p119 = pneg %p118
  $region19: #{hybrid_loss.1} parent=0 // pred_check_branch
    %121 = sbr.rel (%p119) target = $region21
  $region20: #{hybrid_loss.1} parent=0 // pred_region
    %v122 = vld [vmem:[%s81] sm:$0xff]
    %v123 = vld [vmem:[%s81 + $0x8] sm:$0xff]
    %v124 = vld [vmem:[%s93] sm:$0xff]
    %v125 = vld [vmem:[%s93 + $0x8] sm:$0xff]
    %v126 = vld [vmem:[%s105] sm:$0xff]
    %v127 = vld [vmem:[%s105 + $0x8] sm:$0xff]
    %v128 = vmax.f32 %v122, 1e-06
    %v129 = vmax.f32 %v123, 1e-06
    %v130 = vadd.f32 %v128, 1.0
    %v131 = vadd.f32 %v129, 1.0
    %v132 = vlog2.pop %v130
    %v133 = vmul.f32 %v132, 0.6931472
    %v134 = vlog2.pop %v131
    %v135 = vmul.f32 %v134, 0.6931472
    %v136 = vadd.f32 %v124, 1.0
    %v137 = vadd.f32 %v125, 1.0
    %v138 = vlog2.pop %v136
    %v139 = vmul.f32 %v138, 0.6931472
    %v140 = vlog2.pop %v137
    %v141 = vmul.f32 %v140, 0.6931472
    %v142 = vsub.f32 %v133, %v139
    %v143 = vsub.f32 %v135, %v141
    %v144 = vmul.f32 %v142, %v142
    %v145 = vmul.f32 %v143, %v143
    %v146 = vmul.f32 %v126, %v144
    %v147 = vmul.f32 %v127, %v145
    %v148 = vadd.f32 %v146, %v147
    %v149 = vrot.slane %v148, 4
    %v150 = vadd.f32 %v148, %v149
    %v151 = vrot.slane %v150, 2
    %v152 = vadd.f32 %v150, %v151
    %v153 = vrot.slane %v152, 1
    %v154 = vadd.f32 %v152, %v153
    %v155 = vsub.f32 %v128, %v124
    %v156 = vsub.f32 %v129, %v125
    %v157 = vand.u32 2147483647, %v155
    %v158 = vand.u32 2147483647, %v156
    %v159 = vmul.f32 %v126, %v157
    %v160 = vmul.f32 %v127, %v158
    %v161 = vadd.f32 %v159, %v160
    %v162 = vrot.slane %v161, 4
    %v163 = vadd.f32 %v161, %v162
    %v164 = vrot.slane %v163, 2
    %v165 = vadd.f32 %v163, %v164
    %v166 = vrot.slane %v165, 1
    %v167 = vadd.f32 %v165, %v166
    %v168 = vadd.f32 %v126, %v127
    %v169 = vrot.slane %v168, 4
    %v170 = vadd.f32 %v168, %v169
    %v171 = vrot.slane %v170, 2
    %v172 = vadd.f32 %v170, %v171
    %v173 = vrot.slane %v172, 1
    %v174 = vadd.f32 %v172, %v173
    %v175 = vld [vmem:[%s3] sm:$0x1]
    %v176 = vadd.f32 %v175, %v154
    %177 = vst [vmem:[%s3] sm:$0x1] %v176
    %v178 = vld [vmem:[%s3 + $0x1] sm:$0x1]
    %v179 = vadd.f32 %v178, %v167
    %180 = vst [vmem:[%s3 + $0x1] sm:$0x1] %v179
    %v181 = vld [vmem:[%s3 + $0x2] sm:$0x1]
    %v182 = vadd.f32 %v181, %v174
    %183 = vst [vmem:[%s3 + $0x2] sm:$0x1] %v182
  $region21: #{hybrid_loss.1} parent=0 // pred_fallthru
    _
  %p184 = scmp.gt.s32.totalorder %s117, 16
  // Predicated region
  $region22: #{hybrid_loss.1} parent=0 // pred_check
    %p185 = pneg %p184
  $region23: #{hybrid_loss.1} parent=0 // pred_check_branch
    %187 = sbr.rel (%p185) target = $region25
  $region24: #{hybrid_loss.1} parent=0 // pred_region
    %v188 = vlaneseq
    %v189 = vshrl.u32 %v188, 7
    %v190 = vadd.s32 %v189, 8
    %s191 = smul.u32 %s115, 16
    %v192 = vstv %s191
    %v193 = vadd.s32 %v192, %v189
    %v194 = vadd.s32 %v192, %v190
    %vm195 = vcmp.lt.s32.totalorder %v193, 16
    %vm196 = vcmp.lt.s32.totalorder %v194, 16
    %v197 = vld [vmem:[%s81] sm:$0xff]
    %v198 = vld [vmem:[%s81 + $0x8] sm:$0xff]
    %v199 = vsel %vm195, 1, 0
    %v200 = vsel %vm196, 1, 0
    %vm201 = vcmp.eq.s32.totalorder %v199, 1
    %vm202 = vcmp.eq.s32.totalorder %v200, 1
    %v203 = vsel %vm201, %v197, 1.0
    %v204 = vsel %vm202, %v198, 1.0
    %v205 = vld [vmem:[%s93] sm:$0xff]
    %v206 = vld [vmem:[%s93 + $0x8] sm:$0xff]
    %v207 = vsel %vm201, %v205, 1.0
    %v208 = vsel %vm202, %v206, 1.0
    %v209 = vld [vmem:[%s105] sm:$0xff]
    %v210 = vld [vmem:[%s105 + $0x8] sm:$0xff]
    %v211 = vsel %vm201, %v209, 0.0
    %v212 = vsel %vm202, %v210, 0.0
    %v213 = vmax.f32 %v203, 1e-06
    %v214 = vmax.f32 %v204, 1e-06
    %v215 = vadd.f32 %v213, 1.0
    %v216 = vadd.f32 %v214, 1.0
    %v217 = vlog2.pop %v215
    %v218 = vmul.f32 %v217, 0.6931472
    %v219 = vlog2.pop %v216
    %v220 = vmul.f32 %v219, 0.6931472
    %v221 = vadd.f32 %v207, 1.0
    %v222 = vadd.f32 %v208, 1.0
    %v223 = vlog2.pop %v221
    %v224 = vmul.f32 %v223, 0.6931472
    %v225 = vlog2.pop %v222
    %v226 = vmul.f32 %v225, 0.6931472
    %v227 = vsub.f32 %v218, %v224
    %v228 = vsub.f32 %v220, %v226
    %v229 = vmul.f32 %v227, %v227
    %v230 = vmul.f32 %v228, %v228
    %v231 = vmul.f32 %v211, %v229
    %v232 = vmul.f32 %v212, %v230
    %v233 = vadd.f32 %v231, %v232
    %v234 = vrot.slane %v233, 4
    %v235 = vadd.f32 %v233, %v234
    %v236 = vrot.slane %v235, 2
    %v237 = vadd.f32 %v235, %v236
    %v238 = vrot.slane %v237, 1
    %v239 = vadd.f32 %v237, %v238
    %v240 = vsub.f32 %v213, %v207
    %v241 = vsub.f32 %v214, %v208
    %v242 = vand.u32 2147483647, %v240
    %v243 = vand.u32 2147483647, %v241
    %v244 = vmul.f32 %v211, %v242
    %v245 = vmul.f32 %v212, %v243
    %v246 = vadd.f32 %v244, %v245
    %v247 = vrot.slane %v246, 4
    %v248 = vadd.f32 %v246, %v247
    %v249 = vrot.slane %v248, 2
    %v250 = vadd.f32 %v248, %v249
    %v251 = vrot.slane %v250, 1
    %v252 = vadd.f32 %v250, %v251
    %v253 = vadd.f32 %v211, %v212
    %v254 = vrot.slane %v253, 4
    %v255 = vadd.f32 %v253, %v254
    %v256 = vrot.slane %v255, 2
    %v257 = vadd.f32 %v255, %v256
    %v258 = vrot.slane %v257, 1
    %v259 = vadd.f32 %v257, %v258
    %v260 = vld [vmem:[%s3] sm:$0x1]
    %v261 = vadd.f32 %v260, %v239
    %262 = vst [vmem:[%s3] sm:$0x1] %v261
    %v263 = vld [vmem:[%s3 + $0x1] sm:$0x1]
    %v264 = vadd.f32 %v263, %v252
    %265 = vst [vmem:[%s3 + $0x1] sm:$0x1] %v264
    %v266 = vld [vmem:[%s3 + $0x2] sm:$0x1]
    %v267 = vadd.f32 %v266, %v259
    %268 = vst [vmem:[%s3 + $0x2] sm:$0x1] %v267
  $region25: #{hybrid_loss.1} parent=0 // pred_fallthru
    _
  // Predicated region
  $region26: #{hybrid_loss.1} parent=0 // pred_check
    _
  $region27: #{hybrid_loss.1} parent=0 // pred_check_branch
    %270 = sbr.rel (0) target = $region29
  $region28: #{hybrid_loss.1} parent=0 // pred_region
    _
  $region29: #{hybrid_loss.1} parent=0 // pred_fallthru
    _
  // Predicated region
  $region30: #{hybrid_loss.1} parent=0 // pred_check
    _
  $region31: #{hybrid_loss.1} parent=0 // pred_check_branch
    %272 = sbr.rel (0) target = $region33
  $region32: #{hybrid_loss.1} parent=0 // pred_region
    _
  $region33: #{hybrid_loss.1} parent=0 // pred_fallthru
    _

</llo_original>
